<compile_context>
chip_gen: v7x
topology: tpu7x:2x2x1
jax: 0.10.0
libtpu: 0.0.40
codegen_flags: <defaults>
</compile_context>

<pallas_src>
import functools

import jax
import jax.numpy as jnp
from jax import lax
from jax.experimental import pallas as pl
from jax.experimental.pallas import tpu as pltpu


def _round_up(a, m):
    return ((a + m - 1) // m) * m


def _gelu(x, approximate=False):
    if approximate:
        # tanh-approximate GELU runs on the EUP (separate VLIW slot) instead of the long
        # VALU erf polynomial.  Opt-in: PyTorch nn.GELU() default is the exact erf form.
        return jax.nn.gelu(x, approximate=True)
    # PyTorch nn.GELU() default (approximate='none'): 0.5 * x * (1 + erf(x / sqrt(2)))
    return 0.5 * x * (1.0 + lax.erf(x * jnp.float32(0.7071067811865475)))


def classifier_kernel(x_ref, w1_ref, w2_ref, vecs_ref, w3_ref, b3_ref, o_ref, *,
                      gelu_approx):
    # Cast the x tile to the weights' compute dtype (f32 by default, bf16 if the params were
    # prepared with compute_dtype=bfloat16).  Accumulation is always f32.
    x = x_ref[...].astype(w1_ref.dtype)

    b1 = vecs_ref[0:1, :]
    b2 = vecs_ref[1:2, :]
    gamma = vecs_ref[2:3, :]
    beta = vecs_ref[3:4, :]

    # Linear(dim, proj_dim) + GELU
    h = jnp.dot(x, w1_ref[...], preferred_element_type=jnp.float32) + b1
    h = _gelu(h, gelu_approx)

    # Linear(proj_dim, proj_dim) + GELU
    h = jnp.dot(h.astype(w2_ref.dtype), w2_ref[...],
                preferred_element_type=jnp.float32) + b2
    h = _gelu(h, gelu_approx)

    # LayerNorm(proj_dim), eps = 1e-5 (PyTorch default), elementwise affine; all in f32.
    mu = jnp.mean(h, axis=-1, keepdims=True)
    var = jnp.mean(jnp.square(h - mu), axis=-1, keepdims=True)
    h = (h - mu) * lax.rsqrt(var + 1e-5)
    h = h * gamma + beta

    # Linear(proj_dim, num_classes padded to a lane-dense multiple of 128):
    # full-lane unmasked stores on writeback.
    o_ref[...] = (jnp.dot(h.astype(w3_ref.dtype), w3_ref[...],
                          preferred_element_type=jnp.float32)
                  + b3_ref[...]).astype(o_ref.dtype)


@functools.lru_cache(maxsize=None)
def _vmem_limit_bytes():
    # ~7/8 of per-TensorCore VMEM: ~56 MiB on v7x (64 MiB physical), ~112 MiB on v5e/v6e
    # (128 MiB physical).  Leaves headroom for compiler scratch, double-buffered x/out tiles
    # and semaphores.
    try:
        cap = int(pltpu.get_tpu_info().vmem_capacity_bytes)
    except Exception:  # conservative fallback, safe on every generation
        cap = 64 * 1024 * 1024
    return cap * 7 // 8


def prepare_params(raw_params, *, compute_dtype=jnp.float32):
    """One-time weight preprocessing hoisted out of the per-call forward path.

    Casts W1/W2/W3 to the MXU compute dtype (float32 keeps the module's `.float()` semantics;
    bfloat16 halves weight VMEM and roughly doubles MXU throughput), pads the class dimension
    of W3/b3 up to a lane-dense multiple of 128, and packs the four per-feature vectors
    (b1, b2, LN gamma, LN beta) into one (4, proj_dim) operand so the kernel needs fewer
    BlockSpecs / DMAs.
    """
    w1, b1, w2, b2, gamma, beta, w3, b3 = raw_params
    proj_dim = w1.shape[1]
    num_classes = w3.shape[1]
    ncls_pad = max(128, _round_up(num_classes, 128))

    w1c = w1.astype(compute_dtype)
    w2c = w2.astype(compute_dtype)
    w3p = jnp.zeros((proj_dim, ncls_pad), compute_dtype).at[:, :num_classes].set(
        w3.astype(compute_dtype))
    b3p = jnp.zeros((1, ncls_pad), jnp.float32).at[:, :num_classes].set(
        b3.astype(jnp.float32).reshape(1, num_classes))
    vecs = jnp.concatenate(
        [b1.reshape(1, proj_dim), b2.reshape(1, proj_dim),
         gamma.reshape(1, proj_dim), beta.reshape(1, proj_dim)],
        axis=0).astype(jnp.float32)                     # (4, proj_dim)
    return (w1c, w2c, vecs, w3p, b3p)


@functools.partial(jax.jit, static_argnames=("num_classes", "block_b", "gelu_approx"))
def classifier_forward(x, prepared, *, num_classes, block_b=None, gelu_approx=False):
    """x: [B, dim] (backbone's x_norm_clstoken). Returns [B, num_classes] float32."""
    w1, w2, vecs, w3p, b3p = prepared
    B, dim = x.shape
    proj_dim = w1.shape[1]
    ncls_pad = w3p.shape[1]

    # --- Batch tiling: fill the MXU M dimension; guarantee >= 2 grid steps once the batch
    # is big enough so the "parallel" axis can shard across v7x's two TensorCores.  The
    # extra step is ~free on single-TC v5e/v6e because the weights stay resident. ---
    Bp8 = _round_up(B, 8)
    if block_b is None:
        if Bp8 >= 16:
            block_b = min(_round_up((Bp8 + 1) // 2, 8), 512)
        else:
            block_b = Bp8
    else:
        block_b = min(_round_up(block_b, 8), Bp8)
    Bp = _round_up(B, block_b)
    grid = (Bp // block_b,)

    # Pad only the remainder rows, and only when needed (no copy in the common case).
    xp = x if Bp == B else jnp.concatenate(
        [x, jnp.zeros((Bp - B, dim), x.dtype)], axis=0)

    def row_map(i):
        return (i, 0)

    def rep_map(i):
        return (0, 0)

    def weight_spec(shape):
        # Grid-invariant operand: single-buffer it.  Default double-buffering would burn
        # 2x the VMEM for blocks that are never re-fetched.
        return pl.BlockSpec(shape, rep_map, pipeline_mode=pl.Buffered(1))

    def nbytes(a):
        return a.size * a.dtype.itemsize

    cost = pl.CostEstimate(
        flops=2 * Bp * (dim * proj_dim + proj_dim * proj_dim + proj_dim * ncls_pad),
        transcendentals=2 * Bp * proj_dim,                       # two GELUs per row
        bytes_accessed=(nbytes(xp) + nbytes(w1) + nbytes(w2) + nbytes(vecs)
                        + nbytes(w3p) + nbytes(b3p) + Bp * ncls_pad * 4),
    )

    out_padded = pl.pallas_call(
        functools.partial(classifier_kernel, gelu_approx=gelu_approx),
        out_shape=jax.ShapeDtypeStruct((Bp, ncls_pad), jnp.float32),
        grid_spec=pltpu.PrefetchScalarGridSpec(
            num_scalar_prefetch=0,
            grid=grid,
            in_specs=[
                pl.BlockSpec((block_b, dim), row_map),    # x tile (double-buffered)
                weight_spec((dim, proj_dim)),             # W1 (grid-invariant)
                weight_spec((proj_dim, proj_dim)),        # W2 (grid-invariant)
                weight_spec((4, proj_dim)),               # [b1; b2; gamma; beta]
                weight_spec((proj_dim, ncls_pad)),        # W3 (lane-padded)
                weight_spec((1, ncls_pad)),               # b3 (lane-padded)
            ],
            out_specs=pl.BlockSpec((block_b, ncls_pad), row_map),
        ),
        compiler_params=pltpu.CompilerParams(
            dimension_semantics=("parallel",),            # shards batch tiles across v7x's 2 TCs
            vmem_limit_bytes=_vmem_limit_bytes(),
        ),
        cost_estimate=cost,
    )(xp, w1, w2, vecs, w3p, b3p)

    return out_padded[:B, :num_classes]


def init_params(key, dim, proj_dim, num_classes):
    ks = jax.random.split(key, 6)
    scale1 = 1.0 / jnp.sqrt(dim)
    scale2 = 1.0 / jnp.sqrt(proj_dim)
    w1 = jax.random.normal(ks[0], (dim, proj_dim), jnp.float32) * scale1
    b1 = jax.random.normal(ks[1], (1, proj_dim), jnp.float32) * 0.01
    w2 = jax.random.normal(ks[2], (proj_dim, proj_dim), jnp.float32) * scale2
    b2 = jax.random.normal(ks[3], (1, proj_dim), jnp.float32) * 0.01
    gamma = jnp.ones((1, proj_dim), jnp.float32)
    beta = jnp.zeros((1, proj_dim), jnp.float32)
    w3 = jax.random.normal(ks[4], (proj_dim, num_classes), jnp.float32) * scale2
    b3 = jax.random.normal(ks[5], (1, num_classes), jnp.float32) * 0.01
    return (w1, b1, w2, b2, gamma, beta, w3, b3)


def reference_forward(x, params):
    """Plain-JAX reference matching the PyTorch module semantics."""
    w1, b1, w2, b2, gamma, beta, w3, b3 = params
    h = x.astype(jnp.float32) @ w1 + b1
    h = _gelu(h)
    h = h @ w2 + b2
    h = _gelu(h)
    mu = jnp.mean(h, axis=-1, keepdims=True)
    var = jnp.mean(jnp.square(h - mu), axis=-1, keepdims=True)
    h = (h - mu) * lax.rsqrt(var + 1e-5) * gamma + beta
    return h @ w3 + b3


if __name__ == "__main__":
    # Small TPU-aligned shapes consistent with the classifier head.  B=24 exercises the
    # >=2-step batch grid (megacore path), the remainder-row padding, and the output slice.
    B, DIM, PROJ_DIM, NUM_CLASSES = 24, 128, 128, 16

    key = jax.random.PRNGKey(0)
    k_x, k_p = jax.random.split(key)
    x = jax.random.normal(k_x, (B, DIM), jnp.float32)   # backbone cls-token feature
    raw_params = init_params(k_p, DIM, PROJ_DIM, NUM_CLASSES)

    # compute_dtype=jnp.float32 matches the module's explicit `.float()`; pass
    # jnp.bfloat16 for ~2x MXU throughput / half weight VMEM when tolerance allows.
    prepared = prepare_params(raw_params, compute_dtype=jnp.float32)

    out = classifier_forward(x, prepared, num_classes=NUM_CLASSES)
    out = jax.block_until_ready(out)

    ref = reference_forward(x, raw_params)
    assert out.shape == (B, NUM_CLASSES)
    assert jnp.allclose(out, ref, atol=1e-4, rtol=1e-4), "mismatch vs reference"

    print("KERNEL_OK")
</pallas_src>

<mosaic_0001>
module attributes {stable_mosaic.version = 11 : i64} {
  func.func @classifier_kernel(%arg0: i32, %arg1: memref<16x128xf32, #tpu.memory_space<vmem>>, %arg2: memref<128x128xf32, #tpu.memory_space<vmem>>, %arg3: memref<128x128xf32, #tpu.memory_space<vmem>>, %arg4: memref<4x128xf32, #tpu.memory_space<vmem>>, %arg5: memref<128x128xf32, #tpu.memory_space<vmem>>, %arg6: memref<1x128xf32, #tpu.memory_space<vmem>>, %arg7: memref<16x128xf32, #tpu.memory_space<vmem>>) attributes {dimension_semantics = [#tpu.dimension_semantics<parallel>], iteration_bounds = array<i64: 2>, scalar_prefetch = 0 : i64, scratch_operands = 0 : i64, tpu.core_type = #tpu.core_type<tc>, window_params = [{transform_indices = @transform_0, window_bounds = array<i64: 16, 128>}, {pipeline_mode = #tpu.pipeline_mode<synchronous>, transform_indices = @transform_1, window_bounds = array<i64: 128, 128>}, {pipeline_mode = #tpu.pipeline_mode<synchronous>, transform_indices = @transform_2, window_bounds = array<i64: 128, 128>}, {pipeline_mode = #tpu.pipeline_mode<synchronous>, transform_indices = @transform_3, window_bounds = array<i64: 4, 128>}, {pipeline_mode = #tpu.pipeline_mode<synchronous>, transform_indices = @transform_4, window_bounds = array<i64: 128, 128>}, {pipeline_mode = #tpu.pipeline_mode<synchronous>, transform_indices = @transform_5, window_bounds = array<i64: 1, 128>}, {transform_indices = @transform_6, window_bounds = array<i64: 16, 128>}]} {
    %c0 = arith.constant 0 : index
    %c0_0 = arith.constant 0 : index
    %0 = vector.load %arg1[%c0, %c0_0] : memref<16x128xf32, #tpu.memory_space<vmem>>, vector<16x128xf32>
    %c0_1 = arith.constant 0 : index
    %c0_2 = arith.constant 0 : index
    %1 = vector.load %arg4[%c0_1, %c0_2] : memref<4x128xf32, #tpu.memory_space<vmem>>, vector<1x128xf32>
    %c1 = arith.constant 1 : index
    %c0_3 = arith.constant 0 : index
    %2 = vector.load %arg4[%c1, %c0_3] : memref<4x128xf32, #tpu.memory_space<vmem>>, vector<1x128xf32>
    %c2 = arith.constant 2 : index
    %c0_4 = arith.constant 0 : index
    %3 = vector.load %arg4[%c2, %c0_4] : memref<4x128xf32, #tpu.memory_space<vmem>>, vector<1x128xf32>
    %c3 = arith.constant 3 : index
    %c0_5 = arith.constant 0 : index
    %4 = vector.load %arg4[%c3, %c0_5] : memref<4x128xf32, #tpu.memory_space<vmem>>, vector<1x128xf32>
    %c0_6 = arith.constant 0 : index
    %c0_7 = arith.constant 0 : index
    %5 = vector.load %arg2[%c0_6, %c0_7] : memref<128x128xf32, #tpu.memory_space<vmem>>, vector<128x128xf32>
    %cst = arith.constant dense<0.000000e+00> : vector<16x128xf32>
    %6 = tpu.matmul %0, %5, %cst {dimension_numbers = #tpu.dot_dimension_numbers<[1], [0], [0], [1], [0, 0, 1, 1], [], []>} : vector<16x128xf32>, vector<128x128xf32>, vector<16x128xf32> -> vector<16x128xf32>
    %7 = vector.broadcast %1 : vector<1x128xf32> to vector<16x128xf32>
    %8 = arith.addf %6, %7 : vector<16x128xf32>
    %cst_8 = arith.constant 5.000000e-01 : f32
    %9 = vector.broadcast %cst_8 : f32 to vector<16x128xf32>
    %10 = arith.mulf %9, %8 : vector<16x128xf32>
    %cst_9 = arith.constant 0.707106769 : f32
    %11 = vector.broadcast %cst_9 : f32 to vector<16x128xf32>
    %12 = arith.mulf %8, %11 : vector<16x128xf32>
    %13 = math.erf %12 : vector<16x128xf32>
    %cst_10 = arith.constant 1.000000e+00 : f32
    %14 = vector.broadcast %cst_10 : f32 to vector<16x128xf32>
    %15 = arith.addf %14, %13 : vector<16x128xf32>
    %16 = arith.mulf %10, %15 : vector<16x128xf32>
    %c0_11 = arith.constant 0 : index
    %c0_12 = arith.constant 0 : index
    %17 = vector.load %arg3[%c0_11, %c0_12] : memref<128x128xf32, #tpu.memory_space<vmem>>, vector<128x128xf32>
    %cst_13 = arith.constant dense<0.000000e+00> : vector<16x128xf32>
    %18 = tpu.matmul %16, %17, %cst_13 {dimension_numbers = #tpu.dot_dimension_numbers<[1], [0], [0], [1], [0, 0, 1, 1], [], []>} : vector<16x128xf32>, vector<128x128xf32>, vector<16x128xf32> -> vector<16x128xf32>
    %19 = vector.broadcast %2 : vector<1x128xf32> to vector<16x128xf32>
    %20 = arith.addf %18, %19 : vector<16x128xf32>
    %cst_14 = arith.constant 5.000000e-01 : f32
    %21 = vector.broadcast %cst_14 : f32 to vector<16x128xf32>
    %22 = arith.mulf %21, %20 : vector<16x128xf32>
    %cst_15 = arith.constant 0.707106769 : f32
    %23 = vector.broadcast %cst_15 : f32 to vector<16x128xf32>
    %24 = arith.mulf %20, %23 : vector<16x128xf32>
    %25 = math.erf %24 : vector<16x128xf32>
    %cst_16 = arith.constant 1.000000e+00 : f32
    %26 = vector.broadcast %cst_16 : f32 to vector<16x128xf32>
    %27 = arith.addf %26, %25 : vector<16x128xf32>
    %28 = arith.mulf %22, %27 : vector<16x128xf32>
    %cst_17 = arith.constant dense<0.000000e+00> : vector<16xf32>
    %29 = vector.multi_reduction <add>, %28, %cst_17 [1] : vector<16x128xf32> to vector<16xf32>
    %30 = vector.shape_cast %29 : vector<16xf32> to vector<16x1xf32>
    %cst_18 = arith.constant 1.280000e+02 : f32
    %31 = vector.broadcast %cst_18 : f32 to vector<16x1xf32>
    %32 = arith.divf %30, %31 : vector<16x1xf32>
    %33 = vector.broadcast %32 : vector<16x1xf32> to vector<16x128xf32>
    %34 = arith.subf %28, %33 : vector<16x128xf32>
    %35 = arith.mulf %34, %34 : vector<16x128xf32>
    %cst_19 = arith.constant dense<0.000000e+00> : vector<16xf32>
    %36 = vector.multi_reduction <add>, %35, %cst_19 [1] : vector<16x128xf32> to vector<16xf32>
    %37 = vector.shape_cast %36 : vector<16xf32> to vector<16x1xf32>
    %cst_20 = arith.constant 1.280000e+02 : f32
    %38 = vector.broadcast %cst_20 : f32 to vector<16x1xf32>
    %39 = arith.divf %37, %38 : vector<16x1xf32>
    %40 = vector.broadcast %32 : vector<16x1xf32> to vector<16x128xf32>
    %41 = arith.subf %28, %40 : vector<16x128xf32>
    %cst_21 = arith.constant 9.99999974E-6 : f32
    %42 = vector.broadcast %cst_21 : f32 to vector<16x1xf32>
    %43 = arith.addf %39, %42 : vector<16x1xf32>
    %44 = math.rsqrt %43 : vector<16x1xf32>
    %45 = vector.broadcast %44 : vector<16x1xf32> to vector<16x128xf32>
    %46 = arith.mulf %41, %45 : vector<16x128xf32>
    %47 = vector.broadcast %3 : vector<1x128xf32> to vector<16x128xf32>
    %48 = arith.mulf %46, %47 : vector<16x128xf32>
    %49 = vector.broadcast %4 : vector<1x128xf32> to vector<16x128xf32>
    %50 = arith.addf %48, %49 : vector<16x128xf32>
    %c0_22 = arith.constant 0 : index
    %c0_23 = arith.constant 0 : index
    %51 = vector.load %arg5[%c0_22, %c0_23] : memref<128x128xf32, #tpu.memory_space<vmem>>, vector<128x128xf32>
    %cst_24 = arith.constant dense<0.000000e+00> : vector<16x128xf32>
    %52 = tpu.matmul %50, %51, %cst_24 {dimension_numbers = #tpu.dot_dimension_numbers<[1], [0], [0], [1], [0, 0, 1, 1], [], []>} : vector<16x128xf32>, vector<128x128xf32>, vector<16x128xf32> -> vector<16x128xf32>
    %c0_25 = arith.constant 0 : index
    %c0_26 = arith.constant 0 : index
    %53 = vector.load %arg6[%c0_25, %c0_26] : memref<1x128xf32, #tpu.memory_space<vmem>>, vector<1x128xf32>
    %54 = vector.broadcast %53 : vector<1x128xf32> to vector<16x128xf32>
    %55 = arith.addf %52, %54 : vector<16x128xf32>
    %c0_27 = arith.constant 0 : index
    %c0_28 = arith.constant 0 : index
    %56 = vector.load %arg7[%c0_27, %c0_28] : memref<16x128xf32, #tpu.memory_space<vmem>>, vector<16x128xf32>
    tpu.vector_store %arg7[%c0_27, %c0_28], %55 {strides = array<i32>} : memref<16x128xf32, #tpu.memory_space<vmem>>, vector<16x128xf32>,
    return
  }
  func.func @transform_0(%arg0: i32) -> (i32, i32) {
    %c0_i32 = arith.constant 0 : i32
    %c0_i32_0 = arith.constant 0 : i32
    return %arg0, %c0_i32 : i32, i32
  }
  func.func @transform_1(%arg0: i32) -> (i32, i32) {
    %c0_i32 = arith.constant 0 : i32
    %c0_i32_0 = arith.constant 0 : i32
    %c0_i32_1 = arith.constant 0 : i32
    return %c0_i32, %c0_i32_0 : i32, i32
  }
  func.func @transform_2(%arg0: i32) -> (i32, i32) {
    %c0_i32 = arith.constant 0 : i32
    %c0_i32_0 = arith.constant 0 : i32
    %c0_i32_1 = arith.constant 0 : i32
    return %c0_i32, %c0_i32_0 : i32, i32
  }
  func.func @transform_3(%arg0: i32) -> (i32, i32) {
    %c0_i32 = arith.constant 0 : i32
    %c0_i32_0 = arith.constant 0 : i32
    %c0_i32_1 = arith.constant 0 : i32
    return %c0_i32, %c0_i32_0 : i32, i32
  }
  func.func @transform_4(%arg0: i32) -> (i32, i32) {
    %c0_i32 = arith.constant 0 : i32
    %c0_i32_0 = arith.constant 0 : i32
    %c0_i32_1 = arith.constant 0 : i32
    return %c0_i32, %c0_i32_0 : i32, i32
  }
  func.func @transform_5(%arg0: i32) -> (i32, i32) {
    %c0_i32 = arith.constant 0 : i32
    %c0_i32_0 = arith.constant 0 : i32
    %c0_i32_1 = arith.constant 0 : i32
    return %c0_i32, %c0_i32_0 : i32, i32
  }
  func.func @transform_6(%arg0: i32) -> (i32, i32) {
    %c0_i32 = arith.constant 0 : i32
    %c0_i32_0 = arith.constant 0 : i32
    return %arg0, %c0_i32 : i32, i32
  }
}

</mosaic_0001>

<llo_original>
// kernel: classifier_forward.1
$region0: #{classifier_forward.1}
  #allocation0 [shape = 'u32[]', space=smem, size = 0x4, offset = 0x4, fixed_abs, tag = 'smem constant byte address 0x4 - core index']
  #allocation1 [shape = 'u32[144,128]{1,0:T(1,128)}', space=vmem, size = 0x12000, scoped, tag = 'internal scratch']
  %s0 = inlined_call_operand.vmem [shape: f32[32,128], index: 0, kind: input, shape index: {}]
  %s1 = inlined_call_operand.hbm [shape: f32[128,128], index: 1, kind: input, shape index: {}]
  %s2 = inlined_call_operand.hbm [shape: f32[128,128], index: 2, kind: input, shape index: {}]
  %s3 = inlined_call_operand.vmem [shape: f32[4,128], index: 3, kind: input, shape index: {}]
  %s4 = inlined_call_operand.hbm [shape: f32[128,128], index: 4, kind: input, shape index: {}]
  %s5 = inlined_call_operand.vmem [shape: f32[1,128], index: 5, kind: input, shape index: {}]
  %s6 = inlined_call_operand.vmem [shape: f32[32,128], index: 6, kind: output, shape index: {}]
  %s7 = sld [smem:[#allocation0]]
  $region69: #{classifier_forward.1} parent=0
    _
  %s9 = ssub.s32 1, %s7
  %s10 = scalar_select 0, %s9, %s7
  $region1: #{classifier_forward.1} parent=0
    #allocation2 [shape = 'u8[65536]{0}', space=vmem, size = 0x10000, scoped, tag = 'input window, operand 1, single buffered']
    #allocation3 [shape = 's32[2]{0}', space=sflag, size = 0x8, scoped, tag = 'scoped memory for classifier_forward.1']
    #allocation4 [shape = 'u8[65536]{0}', space=vmem, size = 0x10000, scoped, tag = 'input window, operand 2, single buffered']
    #allocation5 [shape = 's32[1]{0}', space=sflag, size = 0x4, scoped, tag = 'scoped memory for classifier_forward.1']
    #allocation6 [shape = 'u8[65536]{0}', space=vmem, size = 0x10000, scoped, tag = 'input window, operand 4, single buffered']
    %11 = vsyncpa [#allocation3], 0
    %12 = vsyncpa [#allocation5], 0
    loop: start=0, step=1, limit=4
    $region2: #{classifier_forward.1} parent=1 // loop_pre_header
      _
    $region3: #{classifier_forward.1} parent=1 // loop_header
      %s14 = sphi 0, %s18
      %p15 = scmp.ge.s32.totalorder %s14, 4
      %s24 = sphi 0, %s26
      %s27 = sphi 0, %s24
      %s28 = sphi 0, %s27
      %s44 = sphi 0, %s28
      %s48 = sphi 0, %s48
      %s50 = sphi 0, %s48
      %s51 = sphi 0, %s50
      %s65 = sphi 0, %s51
      %s69 = sphi 0, %s69
      %s71 = sphi 0, %s69
      %s72 = sphi 0, %s71
      %s86 = sphi 0, %s72
      %s90 = sphi 0, %s90
      %s92 = sphi 0, %s90
      %s93 = sphi 0, %s92
      %s107 = sphi 0, %s93
      %s111 = sphi 0, %s111
      %s113 = sphi 0, %s111
      %s114 = sphi 0, %s113
      %s128 = sphi 0, %s114
      %s132 = sphi 0, %s132
      %s134 = sphi 0, %s132
      %s135 = sphi 0, %s134
      %s149 = sphi 0, %s135
      %s155 = sphi 0, %s157
      %s158 = sphi 0, %s155
      %s159 = sphi 0, %s158
      %s175 = sphi 0, %s159
    $region4: #{classifier_forward.1} parent=1 // loop_header_branch
      %17 = sbr.rel (%p15) target = $region8
    $region5: #{classifier_forward.1} parent=1 // loop_body
      %s19 = ssub.s32 %s14, 1
      %s20 = ssub.s32 %s14, 2
      %s21 = sadd.s32 %s14, 1
      %s22 = ssub.s32 %s14, %s21
      %p23 = scmp.eq.s32.totalorder %s22, 0
      %s25 = sadd.s32 %s24, 1
      %s26 = scalar_select %p23, %s24, %s25
      %p29 = pneg %p23
      %p30 = scmp.eq.s32.totalorder %s14, 1
      %p31 = por %p29, %p30
      %p32 = scmp.ne.s32.totalorder %s24, %s27
      %p33 = scmp.eq.s32.totalorder %s14, 0
      %p34 = por %p32, %p33
      %p35 = scmp.ne.s32.totalorder %s24, %s27
      %p36 = scmp.eq.s32.totalorder %s19, 1
      %p37 = por %p35, %p36
      %p38 = scmp.ne.s32.totalorder %s27, %s28
      %p39 = scmp.eq.s32.totalorder %s19, 0
      %p40 = por %p38, %p39
      %p41 = scmp.ne.s32.totalorder %s27, %s28
      %p42 = scmp.eq.s32.totalorder %s20, 1
      %p43 = por %p41, %p42
      %p45 = scmp.ne.s32.totalorder %s28, %s44
      %p46 = scmp.eq.s32.totalorder %s20, 0
      %p47 = por %p45, %p46
      %s49 = sadd.s32 %s48, 1
      %p52 = scmp.eq.s32.totalorder %s14, 1
      %p53 = scmp.ne.s32.totalorder %s48, %s50
      %p54 = scmp.eq.s32.totalorder %s14, 0
      %p55 = por %p53, %p54
      %p56 = scmp.ne.s32.totalorder %s48, %s50
      %p57 = scmp.eq.s32.totalorder %s19, 1
      %p58 = por %p56, %p57
      %p59 = scmp.ne.s32.totalorder %s50, %s51
      %p60 = scmp.eq.s32.totalorder %s19, 0
      %p61 = por %p59, %p60
      %p62 = scmp.ne.s32.totalorder %s50, %s51
      %p63 = scmp.eq.s32.totalorder %s20, 1
      %p64 = por %p62, %p63
      %p66 = scmp.ne.s32.totalorder %s51, %s65
      %p67 = scmp.eq.s32.totalorder %s20, 0
      %p68 = por %p66, %p67
      %s70 = sadd.s32 %s69, 1
      %p73 = scmp.eq.s32.totalorder %s14, 1
      %p74 = scmp.ne.s32.totalorder %s69, %s71
      %p75 = scmp.eq.s32.totalorder %s14, 0
      %p76 = por %p74, %p75
      %p77 = scmp.ne.s32.totalorder %s69, %s71
      %p78 = scmp.eq.s32.totalorder %s19, 1
      %p79 = por %p77, %p78
      %p80 = scmp.ne.s32.totalorder %s71, %s72
      %p81 = scmp.eq.s32.totalorder %s19, 0
      %p82 = por %p80, %p81
      %p83 = scmp.ne.s32.totalorder %s71, %s72
      %p84 = scmp.eq.s32.totalorder %s20, 1
      %p85 = por %p83, %p84
      %p87 = scmp.ne.s32.totalorder %s72, %s86
      %p88 = scmp.eq.s32.totalorder %s20, 0
      %p89 = por %p87, %p88
      %s91 = sadd.s32 %s90, 1
      %p94 = scmp.eq.s32.totalorder %s14, 1
      %p95 = scmp.ne.s32.totalorder %s90, %s92
      %p96 = scmp.eq.s32.totalorder %s14, 0
      %p97 = por %p95, %p96
      %p98 = scmp.ne.s32.totalorder %s90, %s92
      %p99 = scmp.eq.s32.totalorder %s19, 1
      %p100 = por %p98, %p99
      %p101 = scmp.ne.s32.totalorder %s92, %s93
      %p102 = scmp.eq.s32.totalorder %s19, 0
      %p103 = por %p101, %p102
      %p104 = scmp.ne.s32.totalorder %s92, %s93
      %p105 = scmp.eq.s32.totalorder %s20, 1
      %p106 = por %p104, %p105
      %p108 = scmp.ne.s32.totalorder %s93, %s107
      %p109 = scmp.eq.s32.totalorder %s20, 0
      %p110 = por %p108, %p109
      %s112 = sadd.s32 %s111, 1
      %p115 = scmp.eq.s32.totalorder %s14, 1
      %p116 = scmp.ne.s32.totalorder %s111, %s113
      %p117 = scmp.eq.s32.totalorder %s14, 0
      %p118 = por %p116, %p117
      %p119 = scmp.ne.s32.totalorder %s111, %s113
      %p120 = scmp.eq.s32.totalorder %s19, 1
      %p121 = por %p119, %p120
      %p122 = scmp.ne.s32.totalorder %s113, %s114
      %p123 = scmp.eq.s32.totalorder %s19, 0
      %p124 = por %p122, %p123
      %p125 = scmp.ne.s32.totalorder %s113, %s114
      %p126 = scmp.eq.s32.totalorder %s20, 1
      %p127 = por %p125, %p126
      %p129 = scmp.ne.s32.totalorder %s114, %s128
      %p130 = scmp.eq.s32.totalorder %s20, 0
      %p131 = por %p129, %p130
      %s133 = sadd.s32 %s132, 1
      %p136 = scmp.eq.s32.totalorder %s14, 1
      %p137 = scmp.ne.s32.totalorder %s132, %s134
      %p138 = scmp.eq.s32.totalorder %s14, 0
      %p139 = por %p137, %p138
      %p140 = scmp.ne.s32.totalorder %s132, %s134
      %p141 = scmp.eq.s32.totalorder %s19, 1
      %p142 = por %p140, %p141
      %p143 = scmp.ne.s32.totalorder %s134, %s135
      %p144 = scmp.eq.s32.totalorder %s19, 0
      %p145 = por %p143, %p144
      %p146 = scmp.ne.s32.totalorder %s134, %s135
      %p147 = scmp.eq.s32.totalorder %s20, 1
      %p148 = por %p146, %p147
      %p150 = scmp.ne.s32.totalorder %s135, %s149
      %p151 = scmp.eq.s32.totalorder %s20, 0
      %p152 = por %p150, %p151
      %s153 = ssub.s32 %s14, %s21
      %p154 = scmp.eq.s32.totalorder %s153, 0
      %s156 = sadd.s32 %s155, 1
      %s157 = scalar_select %p154, %s155, %s156
      %p160 = pneg %p154
      %p161 = scmp.eq.s32.totalorder %s14, 1
      %p162 = por %p160, %p161
      %p163 = scmp.ne.s32.totalorder %s155, %s158
      %p164 = scmp.eq.s32.totalorder %s14, 0
      %p165 = por %p163, %p164
      %p166 = scmp.ne.s32.totalorder %s155, %s158
      %p167 = scmp.eq.s32.totalorder %s19, 1
      %p168 = por %p166, %p167
      %p169 = scmp.ne.s32.totalorder %s158, %s159
      %p170 = scmp.eq.s32.totalorder %s19, 0
      %p171 = por %p169, %p170
      %p172 = scmp.ne.s32.totalorder %s158, %s159
      %p173 = scmp.eq.s32.totalorder %s20, 1
      %p174 = por %p172, %p173
      %p176 = scmp.ne.s32.totalorder %s159, %s175
      %p177 = scmp.eq.s32.totalorder %s20, 0
      %p178 = por %p176, %p177
      %p179 = scmp.le.s32.totalorder 1, %s14
      %p180 = scmp.lt.s32.totalorder %s14, 3
      %p181 = pnand %p179, %p180
      %p182 = pneg %p181
      // Predicated region
      $region9: #{classifier_forward.1} parent=5 // pred_check
        _
      $region10: #{classifier_forward.1} parent=5 // pred_check_branch
        %184 = sbr.rel (%p181) target = $region12
      $region11: #{classifier_forward.1} parent=5 // pred_region
        %s185 = ssub.s32 %s14, 1
        // Predicated region
        $region13: #{classifier_forward.1} parent=11 // pred_check
          %p186 = pneg %p61
        $region14: #{classifier_forward.1} parent=11 // pred_check_branch
          %188 = sbr.rel (%p186) target = $region16
        $region15: #{classifier_forward.1} parent=11 // pred_region
          %s190 = ssub.s32 2048, 2048
          %191 = vsyncadd [#allocation3], %s190
          %s192 = sshll.u32 [#allocation2], 4
          %s193 = int_to_ptr.vmem [resolvable:$true] %s192
          %198 = dma.hbm_to_vmem [thread:$0]  %s1, 2048, %s193, [#allocation3], 128, 128, 8
        $region16: #{classifier_forward.1} parent=11 // pred_fallthru
          _
        // Predicated region
        $region17: #{classifier_forward.1} parent=11 // pred_check
          %p199 = pneg %p82
        $region18: #{classifier_forward.1} parent=11 // pred_check_branch
          %201 = sbr.rel (%p199) target = $region20
        $region19: #{classifier_forward.1} parent=11 // pred_region
          %s203 = ssub.s32 2048, 2048
          %204 = vsyncadd [#allocation5], %s203
          %s205 = sshll.u32 [#allocation4], 4
          %s206 = int_to_ptr.vmem [resolvable:$true] %s205
          %211 = dma.hbm_to_vmem [thread:$0]  %s2, 2048, %s206, [#allocation5], 128, 128, 8
        $region20: #{classifier_forward.1} parent=11 // pred_fallthru
          _
        // Predicated region
        $region21: #{classifier_forward.1} parent=11 // pred_check
          %p212 = pneg %p103
        $region22: #{classifier_forward.1} parent=11 // pred_check_branch
          %214 = sbr.rel (%p212) target = $region24
        $region23: #{classifier_forward.1} parent=11 // pred_region
          _
        $region24: #{classifier_forward.1} parent=11 // pred_fallthru
          _
        // Predicated region
        $region25: #{classifier_forward.1} parent=11 // pred_check
          %p215 = pneg %p124
        $region26: #{classifier_forward.1} parent=11 // pred_check_branch
          %217 = sbr.rel (%p215) target = $region28
        $region27: #{classifier_forward.1} parent=11 // pred_region
          %s219 = ssub.s32 2048, 2048
          %220 = vsyncadd [#allocation5], %s219
          %s221 = sshll.u32 [#allocation6], 4
          %s222 = int_to_ptr.vmem [resolvable:$true] %s221
          %227 = dma.hbm_to_vmem [thread:$0]  %s4, 2048, %s222, [#allocation5], 128, 128, 8
        $region28: #{classifier_forward.1} parent=11 // pred_fallthru
          _
        // Predicated region
        $region29: #{classifier_forward.1} parent=11 // pred_check
          %p228 = pneg %p145
        $region30: #{classifier_forward.1} parent=11 // pred_check_branch
          %230 = sbr.rel (%p228) target = $region32
        $region31: #{classifier_forward.1} parent=11 // pred_region
          _
        $region32: #{classifier_forward.1} parent=11 // pred_fallthru
          _
      $region12: #{classifier_forward.1} parent=5 // pred_fallthru
        _
      %p231 = scmp.lt.s32.totalorder %s14, 2
      // Predicated region
      $region33: #{classifier_forward.1} parent=5 // pred_check
        %p232 = pneg %p231
      $region34: #{classifier_forward.1} parent=5 // pred_check_branch
        %234 = sbr.rel (%p232) target = $region36
      $region35: #{classifier_forward.1} parent=5 // pred_region
        // Predicated region
        $region37: #{classifier_forward.1} parent=35 // pred_check
          %p235 = pneg %p34
        $region38: #{classifier_forward.1} parent=35 // pred_check_branch
          %237 = sbr.rel (%p235) target = $region40
        $region39: #{classifier_forward.1} parent=35 // pred_region
          %s238 = smul.u32 2, %s14
          %p239 = scmp.lt.s32.totalorder %s238, 3
          %s240 = scalar_select %p239, %s238, 3
          %s241 = smul.addr %s240, 8
          %s242 = scalar_lea.vmem %s0, %s241
          %s243 = smul.u32 2, %s14
        $region40: #{classifier_forward.1} parent=35 // pred_fallthru
          _
      $region36: #{classifier_forward.1} parent=5 // pred_fallthru
        _
      %p244 = scmp.le.s32.totalorder 1, %s14
      %p245 = scmp.lt.s32.totalorder %s14, 3
      %p246 = pnand %p244, %p245
      %p247 = pneg %p246
      // Predicated region
      $region41: #{classifier_forward.1} parent=5 // pred_check
        _
      $region42: #{classifier_forward.1} parent=5 // pred_check_branch
        %249 = sbr.rel (%p246) target = $region44
      $region43: #{classifier_forward.1} parent=5 // pred_region
        %s250 = ssub.s32 %s14, 1
        // Predicated region
        $region45: #{classifier_forward.1} parent=43 // pred_check
          %p251 = pneg %p61
        $region46: #{classifier_forward.1} parent=43 // pred_check_branch
          %253 = sbr.rel (%p251) target = $region48
        $region47: #{classifier_forward.1} parent=43 // pred_region
          %254 = dma.done [#allocation3], 2048
        $region48: #{classifier_forward.1} parent=43 // pred_fallthru
          _
        // Predicated region
        $region49: #{classifier_forward.1} parent=43 // pred_check
          %p255 = pneg %p82
        $region50: #{classifier_forward.1} parent=43 // pred_check_branch
          %257 = sbr.rel (%p255) target = $region52
        $region51: #{classifier_forward.1} parent=43 // pred_region
          %258 = dma.done [#allocation5], 2048
        $region52: #{classifier_forward.1} parent=43 // pred_fallthru
          _
        // Predicated region
        $region53: #{classifier_forward.1} parent=43 // pred_check
          %p259 = pneg %p124
        $region54: #{classifier_forward.1} parent=43 // pred_check_branch
          %261 = sbr.rel (%p259) target = $region56
        $region55: #{classifier_forward.1} parent=43 // pred_region
          %262 = dma.done [#allocation5], 2048
        $region56: #{classifier_forward.1} parent=43 // pred_fallthru
          _
        %s263 = smul.u32 2, %s19
        %p264 = scmp.lt.s32.totalorder %s263, 3
        %s265 = scalar_select %p264, %s263, 3
        %s266 = smul.addr %s265, 8
        %s267 = scalar_lea.vmem %s0, %s266
        %p268 = pneg %p40
        %p269 = pneg %p37
        %p270 = pneg %p61
        %p271 = pneg %p58
        %p272 = pneg %p82
        %p273 = pneg %p79
        %p274 = pneg %p103
        %p275 = pneg %p100
        %p276 = pneg %p124
        %p277 = pneg %p121
        %p278 = pneg %p145
        %p279 = pneg %p142
        %p280 = pneg %p171
        %p281 = pneg %p168
        %s282 = smul.u32 2, %s19
        %p283 = scmp.lt.s32.totalorder %s282, 3
        %s284 = scalar_select %p283, %s282, 3
        %s285 = smul.addr %s284, 8
        %s286 = scalar_lea.vmem %s6, %s285
        %s287 = smul.u32 2, %s19
        %p288 = scmp.lt.s32.totalorder %s287, 3
        %s289 = scalar_select %p288, %s287, 3
        %s290 = smul.addr %s289, 8
        %s291 = scalar_lea.vmem %s0, %s290
        %s292 = smul.u32 2, %s19
        %s293 = smul.u32 2, %s19
        %p294 = scmp.lt.s32.totalorder %s293, 3
        %s295 = scalar_select %p294, %s293, 3
        %s296 = smul.addr %s295, 8
        %s297 = scalar_lea.vmem %s6, %s296
        %s298 = smul.u32 2, %s19
        %v299 = vld [vmem:[%s291] sm:$0xff]
        %v300 = vld [vmem:[%s291 + $0x8] sm:$0xff]
        %v301 = vld [vmem:[%s3] sm:$0x1]
        %v302 = vld [vmem:[%s3 + $0x1] sm:$0x1]
        %v303 = vld [vmem:[%s3 + $0x2] sm:$0x1]
        %v304 = vld [vmem:[%s3 + $0x3] sm:$0x1]
        %v305 = vld [vmem:[#allocation2] sm:$0xff]
        %v306 = vld [vmem:[#allocation2 + $0x8] sm:$0xff]
        %v307 = vld [vmem:[#allocation2 + $0x10] sm:$0xff]
        %v308 = vld [vmem:[#allocation2 + $0x18] sm:$0xff]
        %v309 = vld [vmem:[#allocation2 + $0x20] sm:$0xff]
        %v310 = vld [vmem:[#allocation2 + $0x28] sm:$0xff]
        %v311 = vld [vmem:[#allocation2 + $0x30] sm:$0xff]
        %v312 = vld [vmem:[#allocation2 + $0x38] sm:$0xff]
        %v313 = vld [vmem:[#allocation2 + $0x40] sm:$0xff]
        %v314 = vld [vmem:[#allocation2 + $0x48] sm:$0xff]
        %v315 = vld [vmem:[#allocation2 + $0x50] sm:$0xff]
        %v316 = vld [vmem:[#allocation2 + $0x58] sm:$0xff]
        %v317 = vld [vmem:[#allocation2 + $0x60] sm:$0xff]
        %v318 = vld [vmem:[#allocation2 + $0x68] sm:$0xff]
        %v319 = vld [vmem:[#allocation2 + $0x70] sm:$0xff]
        %v320 = vld [vmem:[#allocation2 + $0x78] sm:$0xff]
        %v321 = vlaneseq
        %v322 = vshrl.u32 %v321, 7
        %v323 = vsub.s32 0, %v322
        %v324 = vrot.slane %v301, %v323
        %325 = vmatprep.subr.mxu0 0.0
        %326 = vmatpush1.msra.mxu0 %v305
        %327 = vmatprep.subr.mxu0 0.0
        %328 = vmatpush1.msra.mxu0 %v306
        %329 = vmatprep.subr.mxu0 0.0
        %330 = vmatpush1.msra.mxu0 %v307
        %331 = vmatprep.subr.mxu0 0.0
        %332 = vmatpush1.msra.mxu0 %v308
        %333 = vmatprep.subr.mxu0 0.0
        %334 = vmatpush1.msra.mxu0 %v309
        %335 = vmatprep.subr.mxu0 0.0
        %336 = vmatpush1.msra.mxu0 %v310
        %337 = vmatprep.subr.mxu0 0.0
        %338 = vmatpush1.msra.mxu0 %v311
        %339 = vmatprep.subr.mxu0 0.0
        %340 = vmatpush1.msra.mxu0 %v312
        %341 = vmatprep.subr.mxu0 0.0
        %342 = vmatpush1.msra.mxu0 %v313
        %343 = vmatprep.subr.mxu0 0.0
        %344 = vmatpush1.msra.mxu0 %v314
        %345 = vmatprep.subr.mxu0 0.0
        %346 = vmatpush1.msra.mxu0 %v315
        %347 = vmatprep.subr.mxu0 0.0
        %348 = vmatpush1.msra.mxu0 %v316
        %349 = vmatprep.subr.mxu0 0.0
        %350 = vmatpush1.msra.mxu0 %v317
        %351 = vmatprep.subr.mxu0 0.0
        %352 = vmatpush1.msra.mxu0 %v318
        %353 = vmatprep.subr.mxu0 0.0
        %354 = vmatpush1.msra.mxu0 %v319
        %355 = vmatprep.subr.mxu0 0.0
        %356 = vmatpush1.msra.mxu0 %v320
        %357 = vmatprep.subr.mxu0 0.0
        %358 = vmatpush1.msra.mxu0 0.0
        %359 = vmatprep.subr.mxu0 0.0
        %360 = vmatpush1.msra.mxu0 0.0
        %361 = vmatprep.subr.mxu0 0.0
        %362 = vmatpush1.msra.mxu0 0.0
        %363 = vmatprep.subr.mxu0 0.0
        %364 = vmatpush1.msra.mxu0 0.0
        %365 = vmatprep.subr.mxu0 0.0
        %366 = vmatpush1.msra.mxu0 0.0
        %367 = vmatprep.subr.mxu0 0.0
        %368 = vmatpush1.msra.mxu0 0.0
        %369 = vmatprep.subr.mxu0 0.0
        %370 = vmatpush1.msra.mxu0 0.0
        %371 = vmatprep.subr.mxu0 0.0
        %372 = vmatpush1.msra.mxu0 0.0
        %373 = vmatprep.subr.mxu0 0.0
        %374 = vmatpush1.msra.mxu0 0.0
        %375 = vmatprep.subr.mxu0 0.0
        %376 = vmatpush1.msra.mxu0 0.0
        %377 = vmatprep.subr.mxu0 0.0
        %378 = vmatpush1.msra.mxu0 0.0
        %379 = vmatprep.subr.mxu0 0.0
        %380 = vmatpush1.msra.mxu0 0.0
        %381 = vmatprep.subr.mxu0 0.0
        %382 = vmatpush1.msra.mxu0 0.0
        %383 = vmatprep.subr.mxu0 0.0
        %384 = vmatpush1.msra.mxu0 0.0
        %385 = vmatprep.subr.mxu0 0.0
        %386 = vmatpush1.msra.mxu0 0.0
        %387 = vmatprep.subr.mxu0 0.0
        %388 = vmatpush1.msra.mxu0 0.0
        %389 = vmatprep.mubr.f32.mxu0 0.0
        %390 = vmatmul.mubr.f32.gmra.mrb[0].mxu0 %v299
        %v391 = vpop.f32.mrb[0].mxu0
        %v392 = vadd.f32 %v324, %v391
        %v393 = vpop.f32.mrb[0].mxu0
        %394 = vmatprep.mubr.f32.mxu0 0.0
        %395 = vmatmul.mubr.f32.gmra.mrb[0].mxu0 %v300
        %v396 = vpop.f32.mrb[0].mxu0
        %v397 = vadd.f32 %v324, %v396
        %v398 = vpop.f32.mrb[0].mxu0
        %399 = vdwg.mxu0
        %v400 = vmul.f32 %v392, 0.5
        %v401 = vmul.f32 %v397, 0.5
        %v402 = vmul.f32 %v392, 0.70710677
        %v403 = vmul.f32 %v397, 0.70710677
        %v404 = verf.f32.pop %v402
        %v405 = verf.f32.pop %v403
        %v406 = vadd.f32 %v404, 1.0
        %v407 = vadd.f32 %v405, 1.0
        %v408 = vmul.f32 %v400, %v406
        %v409 = vmul.f32 %v401, %v407
        %v410 = vld [vmem:[#allocation4] sm:$0xff]
        %v411 = vld [vmem:[#allocation4 + $0x8] sm:$0xff]
        %v412 = vld [vmem:[#allocation4 + $0x10] sm:$0xff]
        %v413 = vld [vmem:[#allocation4 + $0x18] sm:$0xff]
        %v414 = vld [vmem:[#allocation4 + $0x20] sm:$0xff]
        %v415 = vld [vmem:[#allocation4 + $0x28] sm:$0xff]
        %v416 = vld [vmem:[#allocation4 + $0x30] sm:$0xff]
        %v417 = vld [vmem:[#allocation4 + $0x38] sm:$0xff]
        %v418 = vld [vmem:[#allocation4 + $0x40] sm:$0xff]
        %v419 = vld [vmem:[#allocation4 + $0x48] sm:$0xff]
        %v420 = vld [vmem:[#allocation4 + $0x50] sm:$0xff]
        %v421 = vld [vmem:[#allocation4 + $0x58] sm:$0xff]
        %v422 = vld [vmem:[#allocation4 + $0x60] sm:$0xff]
        %v423 = vld [vmem:[#allocation4 + $0x68] sm:$0xff]
        %v424 = vld [vmem:[#allocation4 + $0x70] sm:$0xff]
        %v425 = vld [vmem:[#allocation4 + $0x78] sm:$0xff]
        %v426 = vlaneseq
        %v427 = vshrl.u32 %v426, 7
        %v428 = vsub.s32 0, %v427
        %v429 = vrot.slane %v302, %v428
        %430 = vmatprep.subr.mxu0 0.0
        %431 = vmatpush1.msra.mxu0 %v410
        %432 = vmatprep.subr.mxu0 0.0
        %433 = vmatpush1.msra.mxu0 %v411
        %434 = vmatprep.subr.mxu0 0.0
        %435 = vmatpush1.msra.mxu0 %v412
        %436 = vmatprep.subr.mxu0 0.0
        %437 = vmatpush1.msra.mxu0 %v413
        %438 = vmatprep.subr.mxu0 0.0
        %439 = vmatpush1.msra.mxu0 %v414
        %440 = vmatprep.subr.mxu0 0.0
        %441 = vmatpush1.msra.mxu0 %v415
        %442 = vmatprep.subr.mxu0 0.0
        %443 = vmatpush1.msra.mxu0 %v416
        %444 = vmatprep.subr.mxu0 0.0
        %445 = vmatpush1.msra.mxu0 %v417
        %446 = vmatprep.subr.mxu0 0.0
        %447 = vmatpush1.msra.mxu0 %v418
        %448 = vmatprep.subr.mxu0 0.0
        %449 = vmatpush1.msra.mxu0 %v419
        %450 = vmatprep.subr.mxu0 0.0
        %451 = vmatpush1.msra.mxu0 %v420
        %452 = vmatprep.subr.mxu0 0.0
        %453 = vmatpush1.msra.mxu0 %v421
        %454 = vmatprep.subr.mxu0 0.0
        %455 = vmatpush1.msra.mxu0 %v422
        %456 = vmatprep.subr.mxu0 0.0
        %457 = vmatpush1.msra.mxu0 %v423
        %458 = vmatprep.subr.mxu0 0.0
        %459 = vmatpush1.msra.mxu0 %v424
        %460 = vmatprep.subr.mxu0 0.0
        %461 = vmatpush1.msra.mxu0 %v425
        %462 = vmatprep.subr.mxu0 0.0
        %463 = vmatpush1.msra.mxu0 0.0
        %464 = vmatprep.subr.mxu0 0.0
        %465 = vmatpush1.msra.mxu0 0.0
        %466 = vmatprep.subr.mxu0 0.0
        %467 = vmatpush1.msra.mxu0 0.0
        %468 = vmatprep.subr.mxu0 0.0
        %469 = vmatpush1.msra.mxu0 0.0
        %470 = vmatprep.subr.mxu0 0.0
        %471 = vmatpush1.msra.mxu0 0.0
        %472 = vmatprep.subr.mxu0 0.0
        %473 = vmatpush1.msra.mxu0 0.0
        %474 = vmatprep.subr.mxu0 0.0
        %475 = vmatpush1.msra.mxu0 0.0
        %476 = vmatprep.subr.mxu0 0.0
        %477 = vmatpush1.msra.mxu0 0.0
        %478 = vmatprep.subr.mxu0 0.0
        %479 = vmatpush1.msra.mxu0 0.0
        %480 = vmatprep.subr.mxu0 0.0
        %481 = vmatpush1.msra.mxu0 0.0
        %482 = vmatprep.subr.mxu0 0.0
        %483 = vmatpush1.msra.mxu0 0.0
        %484 = vmatprep.subr.mxu0 0.0
        %485 = vmatpush1.msra.mxu0 0.0
        %486 = vmatprep.subr.mxu0 0.0
        %487 = vmatpush1.msra.mxu0 0.0
        %488 = vmatprep.subr.mxu0 0.0
        %489 = vmatpush1.msra.mxu0 0.0
        %490 = vmatprep.subr.mxu0 0.0
        %491 = vmatpush1.msra.mxu0 0.0
        %492 = vmatprep.subr.mxu0 0.0
        %493 = vmatpush1.msra.mxu0 0.0
        %494 = vmatprep.mubr.f32.mxu0 0.0
        %495 = vmatmul.mubr.f32.gmra.mrb[0].mxu0 %v408
        %v496 = vpop.f32.mrb[0].mxu0
        %v497 = vadd.f32 %v429, %v496
        %v498 = vpop.f32.mrb[0].mxu0
        %499 = vmatprep.mubr.f32.mxu0 0.0
        %500 = vmatmul.mubr.f32.gmra.mrb[0].mxu0 %v409
        %v501 = vpop.f32.mrb[0].mxu0
        %v502 = vadd.f32 %v429, %v501
        %v503 = vpop.f32.mrb[0].mxu0
        %504 = vdwg.mxu0
        %v505 = vmul.f32 %v497, 0.5
        %v506 = vmul.f32 %v502, 0.5
        %v507 = vmul.f32 %v497, 0.70710677
        %v508 = vmul.f32 %v502, 0.70710677
        %v509 = verf.f32.pop %v507
        %v510 = verf.f32.pop %v508
        %v511 = vadd.f32 %v509, 1.0
        %v512 = vadd.f32 %v510, 1.0
        %v513 = vmul.f32 %v505, %v511
        %v514 = vmul.f32 %v506, %v512
        %515 = vadd.xlane.f32.xlu0 %v513
        %v516 = vpop.xlane.xlu0 %515
        %517 = vadd.xlane.f32.xlu0 %v514
        %v518 = vpop.xlane.xlu0 %517
        %v519 = vrcp.pop 128.0
        %v520 = vmul.f32 %v516, %v519
        %v521 = vmul.f32 %v518, %v519
        %v522 = vsub.f32 %v513, %v520
        %v523 = vsub.f32 %v514, %v521
        %v524 = vmul.f32 %v522, %v522
        %v525 = vmul.f32 %v523, %v523
        %526 = vadd.xlane.f32.xlu0 %v524
        %v527 = vpop.xlane.xlu0 %526
        %528 = vadd.xlane.f32.xlu0 %v525
        %v529 = vpop.xlane.xlu0 %528
        %v530 = vmul.f32 %v527, %v519
        %v531 = vmul.f32 %v529, %v519
        %v532 = vadd.f32 %v530, 1e-05
        %v533 = vadd.f32 %v531, 1e-05
        %v534 = vrsqrt.pop %v532
        %v535 = vrsqrt.pop %v533
        %v536 = vmul.f32 %v522, %v534
        %v537 = vmul.f32 %v523, %v535
        %v538 = vlaneseq
        %v539 = vshrl.u32 %v538, 7
        %v540 = vsub.s32 0, %v539
        %v541 = vrot.slane %v303, %v540
        %v542 = vmul.f32 %v536, %v541
        %v543 = vmul.f32 %v537, %v541
        %v544 = vlaneseq
        %v545 = vshrl.u32 %v544, 7
        %v546 = vsub.s32 0, %v545
        %v547 = vrot.slane %v304, %v546
        %v548 = vadd.f32 %v542, %v547
        %v549 = vadd.f32 %v543, %v547
        %v550 = vld [vmem:[#allocation6] sm:$0xff]
        %v551 = vld [vmem:[#allocation6 + $0x8] sm:$0xff]
        %v552 = vld [vmem:[#allocation6 + $0x10] sm:$0xff]
        %v553 = vld [vmem:[#allocation6 + $0x18] sm:$0xff]
        %v554 = vld [vmem:[#allocation6 + $0x20] sm:$0xff]
        %v555 = vld [vmem:[#allocation6 + $0x28] sm:$0xff]
        %v556 = vld [vmem:[#allocation6 + $0x30] sm:$0xff]
        %v557 = vld [vmem:[#allocation6 + $0x38] sm:$0xff]
        %v558 = vld [vmem:[#allocation6 + $0x40] sm:$0xff]
        %v559 = vld [vmem:[#allocation6 + $0x48] sm:$0xff]
        %v560 = vld [vmem:[#allocation6 + $0x50] sm:$0xff]
        %v561 = vld [vmem:[#allocation6 + $0x58] sm:$0xff]
        %v562 = vld [vmem:[#allocation6 + $0x60] sm:$0xff]
        %v563 = vld [vmem:[#allocation6 + $0x68] sm:$0xff]
        %v564 = vld [vmem:[#allocation6 + $0x70] sm:$0xff]
        %v565 = vld [vmem:[#allocation6 + $0x78] sm:$0xff]
        %v566 = vld [vmem:[%s5] sm:$0x1]
        %v568 = vlaneseq
        %v569 = vshrl.u32 %v568, 7
        %v570 = vsub.s32 0, %v569
        %v571 = vrot.slane %v566, %v570
        %573 = vmatprep.subr.mxu0 0.0
        %574 = vmatpush1.msra.mxu0 %v550
        %575 = vmatprep.subr.mxu0 0.0
        %576 = vmatpush1.msra.mxu0 %v551
        %577 = vmatprep.subr.mxu0 0.0
        %578 = vmatpush1.msra.mxu0 %v552
        %579 = vmatprep.subr.mxu0 0.0
        %580 = vmatpush1.msra.mxu0 %v553
        %581 = vmatprep.subr.mxu0 0.0
        %582 = vmatpush1.msra.mxu0 %v554
        %583 = vmatprep.subr.mxu0 0.0
        %584 = vmatpush1.msra.mxu0 %v555
        %585 = vmatprep.subr.mxu0 0.0
        %586 = vmatpush1.msra.mxu0 %v556
        %587 = vmatprep.subr.mxu0 0.0
        %588 = vmatpush1.msra.mxu0 %v557
        %589 = vmatprep.subr.mxu0 0.0
        %590 = vmatpush1.msra.mxu0 %v558
        %591 = vmatprep.subr.mxu0 0.0
        %592 = vmatpush1.msra.mxu0 %v559
        %593 = vmatprep.subr.mxu0 0.0
        %594 = vmatpush1.msra.mxu0 %v560
        %595 = vmatprep.subr.mxu0 0.0
        %596 = vmatpush1.msra.mxu0 %v561
        %597 = vmatprep.subr.mxu0 0.0
        %598 = vmatpush1.msra.mxu0 %v562
        %599 = vmatprep.subr.mxu0 0.0
        %600 = vmatpush1.msra.mxu0 %v563
        %601 = vmatprep.subr.mxu0 0.0
        %602 = vmatpush1.msra.mxu0 %v564
        %603 = vmatprep.subr.mxu0 0.0
        %604 = vmatpush1.msra.mxu0 %v565
        %605 = vmatprep.subr.mxu0 0.0
        %606 = vmatpush1.msra.mxu0 0.0
        %607 = vmatprep.subr.mxu0 0.0
        %608 = vmatpush1.msra.mxu0 0.0
        %609 = vmatprep.subr.mxu0 0.0
        %610 = vmatpush1.msra.mxu0 0.0
        %611 = vmatprep.subr.mxu0 0.0
        %612 = vmatpush1.msra.mxu0 0.0
        %613 = vmatprep.subr.mxu0 0.0
        %614 = vmatpush1.msra.mxu0 0.0
        %615 = vmatprep.subr.mxu0 0.0
        %616 = vmatpush1.msra.mxu0 0.0
        %617 = vmatprep.subr.mxu0 0.0
        %618 = vmatpush1.msra.mxu0 0.0
        %619 = vmatprep.subr.mxu0 0.0
        %620 = vmatpush1.msra.mxu0 0.0
        %621 = vmatprep.subr.mxu0 0.0
        %622 = vmatpush1.msra.mxu0 0.0
        %623 = vmatprep.subr.mxu0 0.0
        %624 = vmatpush1.msra.mxu0 0.0
        %625 = vmatprep.subr.mxu0 0.0
        %626 = vmatpush1.msra.mxu0 0.0
        %627 = vmatprep.subr.mxu0 0.0
        %628 = vmatpush1.msra.mxu0 0.0
        %629 = vmatprep.subr.mxu0 0.0
        %630 = vmatpush1.msra.mxu0 0.0
        %631 = vmatprep.subr.mxu0 0.0
        %632 = vmatpush1.msra.mxu0 0.0
        %633 = vmatprep.subr.mxu0 0.0
        %634 = vmatpush1.msra.mxu0 0.0
        %635 = vmatprep.subr.mxu0 0.0
        %636 = vmatpush1.msra.mxu0 0.0
        %637 = vmatprep.mubr.f32.mxu0 0.0
        %638 = vmatmul.mubr.f32.gmra.mrb[0].mxu0 %v548
        %v639 = vpop.f32.mrb[0].mxu0
        %v640 = vadd.f32 %v571, %v639
        %v641 = vpop.f32.mrb[0].mxu0
        %642 = vmatprep.mubr.f32.mxu0 0.0
        %643 = vmatmul.mubr.f32.gmra.mrb[0].mxu0 %v549
        %v644 = vpop.f32.mrb[0].mxu0
        %v645 = vadd.f32 %v571, %v644
        %v646 = vpop.f32.mrb[0].mxu0
        %647 = vdwg.mxu0
        %648 = vst [vmem:[%s297] sm:$0xff] %v640
        %649 = vst [vmem:[%s297 + $0x8] sm:$0xff] %v645
        %s650 = smul.u32 2, %s19
        %p651 = scmp.lt.s32.totalorder %s650, 3
        %s652 = scalar_select %p651, %s650, 3
        %s653 = smul.addr %s652, 8
        %s654 = scalar_lea.vmem %s6, %s653
        // Predicated region
        $region57: #{classifier_forward.1} parent=43 // pred_check
          %p655 = pneg %p168
        $region58: #{classifier_forward.1} parent=43 // pred_check_branch
          %657 = sbr.rel (%p655) target = $region60
        $region59: #{classifier_forward.1} parent=43 // pred_region
          %s658 = smul.u32 2, %s19
        $region60: #{classifier_forward.1} parent=43 // pred_fallthru
          _
      $region44: #{classifier_forward.1} parent=5 // pred_fallthru
        _
      %p659 = scmp.le.s32.totalorder 2, %s14
      // Predicated region
      $region61: #{classifier_forward.1} parent=5 // pred_check
        %p660 = pneg %p659
      $region62: #{classifier_forward.1} parent=5 // pred_check_branch
        %662 = sbr.rel (%p660) target = $region64
      $region63: #{classifier_forward.1} parent=5 // pred_region
        %s663 = ssub.s32 %s14, 2
        // Predicated region
        $region65: #{classifier_forward.1} parent=63 // pred_check
          %p664 = pneg %p174
        $region66: #{classifier_forward.1} parent=63 // pred_check_branch
          %666 = sbr.rel (%p664) target = $region68
        $region67: #{classifier_forward.1} parent=63 // pred_region
          %s667 = smul.u32 2, %s20
          %p668 = scmp.lt.s32.totalorder %s667, 3
          %s669 = scalar_select %p668, %s667, 3
          %s670 = smul.addr %s669, 8
          %s671 = scalar_lea.vmem %s6, %s670
        $region68: #{classifier_forward.1} parent=63 // pred_fallthru
          _
      $region64: #{classifier_forward.1} parent=5 // pred_fallthru
        _
    $region6: #{classifier_forward.1} parent=1 // loop_footer
      %s18 = sadd.s32 1, %s14
    $region7: #{classifier_forward.1} parent=1 // loop_footer_branch
      %13 = sbr.rel target = $region3
    $region8: #{classifier_forward.1} parent=1 // loop_exit
      _
    %672 = vsyncpa [#allocation3], 1
    %s673 = scalar_lea.sflag [#allocation3], 1
    %674 = vsyncpa %s673, 1
    %675 = vsyncpa [#allocation5], 1

</llo_original>
